<compile_context>
chip_gen: v7x
topology: tpu7x:2x2x1
jax: 0.10.0
libtpu: 0.0.40
codegen_flags: <defaults>
</compile_context>

<pallas_src>
import functools

import jax
import jax.numpy as jnp
from jax import lax
from jax.experimental import pallas as pl
from jax.experimental.pallas import tpu as pltpu

LANE = 128
VMEM_BUDGET = 48 << 20          # per-step live budget, safe for v7x's 64 MiB VMEM


def _round_up(x, m):
    return ((x + m - 1) // m) * m


def _pad2(a, rows, cols):
    return jnp.pad(a, ((0, rows - a.shape[0]), (0, cols - a.shape[1])))


def _per_step_vmem_bytes(bb, L, Cp, Wp, cbytes):
    """Rough per-grid-step VMEM footprint (double-buffered I/O + live intermediates)."""
    M = bb * L
    io = 2 * 2 * M * Cp * 4                               # x + out blocks, 2x buffered, f32
    inter = M * (2 * Wp * 4 + 4 * Wp * cbytes + Cp * 4)   # h1/h2 f32, taps in compute dtype, h3 f32
    weights = 2 * cbytes * (2 * Cp * Wp + 3 * Wp * Wp) + 4 * (2 * Wp + Cp)
    return io + inter + weights


def _choose_block_batch(N, L, Cp, Wp, cbytes, target_rows=4096):
    """Whole samples per grid step: big M for MXU/overhead amortization, but keep
    >= min(N, 4) grid steps (pipelining + both v7x TCs) and stay under VMEM_BUDGET."""
    bb = max(1, min(N, target_rows // max(L, 1)))
    bb = min(bb, max(1, N // min(N, 4)))
    while bb > 1 and _per_step_vmem_bytes(bb, L, Cp, Wp, cbytes) > VMEM_BUDGET:
        bb -= 1
    while bb > 1 and (N % bb or (bb * L) % 8):
        bb -= 1
    if N % bb or ((bb * L) % 8 and bb != N):
        bb = N   # full-rows block is always layout-legal (degenerate 1-step grid fallback)
    return bb


def _bottleneck_kernel(x_ref, w1_ref, w2a_ref, w2b_ref, w2c_ref, w3_ref,
                       b1_ref, b2_ref, b3_ref, o_ref, *,
                       rows_per_sample, compute_dtype):
    """One grid step: a lane-dense (M, Cp) row slab holding whole samples.

    Weights already contain the folded BN scale and are pre-transposed to (in, out),
    so each conv is a plain rows @ weights MXU matmul with f32 accumulation.
    """
    M, _ = x_ref.shape
    L = rows_per_sample

    # ---- conv1 (1x1) + bn1 (scale folded) + relu --------------------------------
    h1 = jnp.dot(x_ref[...].astype(compute_dtype), w1_ref[...],
                 preferred_element_type=jnp.float32)
    h1 = jnp.maximum(h1 + b1_ref[...], 0.0)               # (M, Wp) f32

    # ---- conv2 (1x3, pad=1): three accumulating matmuls over row-shifted taps ----
    # Shifts via XLU roll; rows that would cross a sample boundary inside the block
    # are zeroed, reproducing the conv's zero padding and preventing cross-sample
    # leakage.  Masks come from an (M, 1) iota and broadcast along lanes in the where.
    row = lax.broadcasted_iota(jnp.int32, (M, 1), 0) % L
    h_prev = jnp.where(row == 0, 0.0, pltpu.roll(h1, shift=1, axis=0))
    h_next = jnp.where(row == L - 1, 0.0, pltpu.roll(h1, shift=M - 1, axis=0))
    h2 = jnp.dot(h_prev.astype(compute_dtype), w2a_ref[...],
                 preferred_element_type=jnp.float32)
    h2 = h2 + jnp.dot(h1.astype(compute_dtype), w2b_ref[...],
                      preferred_element_type=jnp.float32)
    h2 = h2 + jnp.dot(h_next.astype(compute_dtype), w2c_ref[...],
                      preferred_element_type=jnp.float32)
    h2 = jnp.maximum(h2 + b2_ref[...], 0.0)                # (M, Wp) f32

    # ---- conv3 (1x1) + bn3 + residual (re-read VMEM-resident x) + relu ----------
    h3 = jnp.dot(h2.astype(compute_dtype), w3_ref[...],
                 preferred_element_type=jnp.float32) + b3_ref[...]
    o_ref[...] = jnp.maximum(h3 + x_ref[...], 0.0).astype(o_ref.dtype)


def bottleneck1d_pallas(x_ncl, params, *, compute_dtype=jnp.bfloat16,
                        block_batch=None, return_padded_nlc=False):
    """x_ncl: (N, Cin, L) float32 in PyTorch NCL layout.  Returns (N, Cout, L) float32
    (or the lane-padded (N, L, Cp) slab if return_padded_nlc, skipping the extra HBM
    round trip when the surrounding network stays channels-last)."""
    (w1, w2, w3, s1, b1, s2, b2, s3, b3) = params
    N, Cin, L = x_ncl.shape
    width = w1.shape[0]
    Cout = w3.shape[0]
    assert Cout == Cin, "identity shortcut requires inplanes == planes*expansion"

    # Lane-dense channel sizes (multiples of 128): full 128-lane vregs, full MXU cols.
    Cp = _round_up(Cin, LANE)
    Wp = _round_up(width, LANE)
    cbytes = jnp.dtype(compute_dtype).itemsize

    # Fold eval-mode BN scale into the conv weights (one-time, host side) and
    # pre-transpose to (in, out) so the kernel does plain row @ weight matmuls.
    w1f = _pad2(w1.T * s1, Cp, Wp).astype(compute_dtype)          # (Cp, Wp)
    w2a = _pad2(w2[:, :, 0].T * s2, Wp, Wp).astype(compute_dtype)
    w2b = _pad2(w2[:, :, 1].T * s2, Wp, Wp).astype(compute_dtype)
    w2c = _pad2(w2[:, :, 2].T * s2, Wp, Wp).astype(compute_dtype)
    w3f = _pad2(w3.T * s3, Wp, Cp).astype(compute_dtype)          # (Wp, Cp)
    b1p = _pad2(b1, 1, Wp)
    b2p = _pad2(b2, 1, Wp)
    b3p = _pad2(b3, 1, Cp)

    # NCL -> flat (N*L, Cp) rows (XLA glue; vanishes in an NLC, lane-padded network).
    # TODO(synk): ingest NCL directly and transpose on the XLU inside the kernel once
    # Mosaic relayouts for narrow tiles are verified on all target chips.
    x_rows = jnp.pad(jnp.transpose(x_ncl, (0, 2, 1)),
                     ((0, 0), (0, 0), (0, Cp - Cin))).reshape(N * L, Cp)

    if block_batch is None:
        block_batch = _choose_block_batch(N, L, Cp, Wp, cbytes)
    block_rows = block_batch * L
    assert N % block_batch == 0
    assert block_rows % 8 == 0 or block_batch == N, "row block must be sublane aligned"
    grid = (N // block_batch,)
    # TODO(synk): for very long L also tile L through the grid with a +-1-row halo
    # (single-sample blocks that overflow the ~48 MiB per-step budget on v7x).

    vmem_limit = int(min(64 << 20,
                         max(32 << 20,
                             4 * _per_step_vmem_bytes(block_batch, L, Cp, Wp, cbytes))))

    full = lambda arr: pl.BlockSpec(arr.shape, lambda g: (0,) * arr.ndim)
    kernel = functools.partial(_bottleneck_kernel, rows_per_sample=L,
                               compute_dtype=compute_dtype)
    out_rows = pl.pallas_call(
        kernel,
        out_shape=jax.ShapeDtypeStruct((N * L, Cp), jnp.float32),
        grid_spec=pltpu.PrefetchScalarGridSpec(
            num_scalar_prefetch=0,
            grid=grid,
            in_specs=[
                pl.BlockSpec((block_rows, Cp), lambda g: (g, 0)),   # x rows
                full(w1f), full(w2a), full(w2b), full(w2c), full(w3f),
                full(b1p), full(b2p), full(b3p),
            ],
            out_specs=pl.BlockSpec((block_rows, Cp), lambda g: (g, 0)),
        ),
        compiler_params=pltpu.CompilerParams(
            dimension_semantics=("parallel",),
            vmem_limit_bytes=vmem_limit),
    )(x_rows, w1f, w2a, w2b, w2c, w3f, b1p, b2p, b3p)

    out_nlc = out_rows.reshape(N, L, Cp)
    if return_padded_nlc:
        return out_nlc                                      # stay channels-last, padded
    return jnp.transpose(out_nlc[:, :, :Cout], (0, 2, 1))   # NLC -> NCL


def _fold_bn(gamma, beta, mean, var, eps=1e-5):
    scale = gamma / jnp.sqrt(var + eps)
    bias = beta - mean * scale
    return scale[None, :], bias[None, :]                    # (1, C) for lane broadcast


def _reference(x_ncl, params):
    """Pure-JAX NCL reference mirroring the PyTorch forward (eval-mode BN)."""
    (w1, w2, w3, s1, b1, s2, b2, s3, b3) = params
    relu = lambda t: jnp.maximum(t, 0.0)
    h = jnp.einsum('ncl,oc->nol', x_ncl, w1)
    h = relu(h * s1.T[None] + b1.T[None])
    hp = jnp.pad(h, ((0, 0), (0, 0), (1, 1)))
    h = (jnp.einsum('ncl,oc->nol', hp[:, :, 0:-2], w2[:, :, 0])
         + jnp.einsum('ncl,oc->nol', hp[:, :, 1:-1], w2[:, :, 1])
         + jnp.einsum('ncl,oc->nol', hp[:, :, 2:], w2[:, :, 2]))
    h = relu(h * s2.T[None] + b2.T[None])
    h = jnp.einsum('ncl,oc->nol', h, w3)
    h = h * s3.T[None] + b3.T[None]
    return relu(h + x_ncl)


if __name__ == "__main__":
    # Module hyperparameters (small, consistent with Bottleneck1d defaults).
    planes = 16
    expansion = 4
    inplanes = planes * expansion      # 64 -> identity shortcut valid
    width = planes                     # base_width=64, groups=1 -> width = planes
    N, L = 2, 16

    key = jax.random.PRNGKey(0)
    ks = jax.random.split(key, 13)

    x = jax.random.normal(ks[0], (N, inplanes, L), jnp.float32)

    # Conv weights (PyTorch shapes, kernel dim squeezed for the 1x1s).
    w1 = jax.random.normal(ks[1], (width, inplanes), jnp.float32) * 0.1
    w2 = jax.random.normal(ks[2], (width, width, 3), jnp.float32) * 0.1
    w3 = jax.random.normal(ks[3], (inplanes, width), jnp.float32) * 0.1

    # BatchNorm params (eval mode), folded to scale/bias.
    g1 = jax.random.normal(ks[4], (width,)) * 0.1 + 1.0
    be1 = jax.random.normal(ks[5], (width,)) * 0.1
    m1 = jax.random.normal(ks[6], (width,)) * 0.1
    v1 = jnp.abs(jax.random.normal(ks[7], (width,))) + 0.5
    g2 = jnp.ones((width,)); be2 = jnp.zeros((width,))
    m2 = jax.random.normal(ks[8], (width,)) * 0.1
    v2 = jnp.abs(jax.random.normal(ks[9], (width,))) + 0.5
    g3 = jax.random.normal(ks[10], (inplanes,)) * 0.1 + 1.0
    be3 = jax.random.normal(ks[11], (inplanes,)) * 0.1
    m3 = jax.random.normal(ks[12], (inplanes,)) * 0.1
    v3 = jnp.ones((inplanes,))

    s1, b1 = _fold_bn(g1, be1, m1, v1)
    s2, b2 = _fold_bn(g2, be2, m2, v2)
    s3, b3 = _fold_bn(g3, be3, m3, v3)

    params = (w1, w2, w3, s1, b1, s2, b2, s3, b3)
    ref = _reference(x, params)

    # 1) Exactness: f32 compute path must match the PyTorch-equivalent reference.
    out_f32 = jax.block_until_ready(
        bottleneck1d_pallas(x, params, compute_dtype=jnp.float32))
    assert out_f32.shape == (N, inplanes, L)
    assert jnp.allclose(out_f32, ref, atol=1e-4, rtol=1e-4), "f32 mismatch vs reference"

    # 2) Fast path: bf16 MXU inputs, f32 accumulation/bias/residual (looser tolerance).
    out_bf16 = jax.block_until_ready(
        bottleneck1d_pallas(x, params, compute_dtype=jnp.bfloat16))
    assert out_bf16.shape == (N, inplanes, L)
    assert jnp.allclose(out_bf16, ref, atol=1e-1, rtol=5e-2), "bf16 drift too large"

    print("KERNEL_OK")
</pallas_src>

<mosaic_0001>
module attributes {stable_mosaic.version = 11 : i64} {
  func.func @_bottleneck_kernel(%arg0: i32, %arg1: memref<16x128xf32, #tpu.memory_space<vmem>>, %arg2: memref<128x128xf32, #tpu.memory_space<vmem>>, %arg3: memref<128x128xf32, #tpu.memory_space<vmem>>, %arg4: memref<128x128xf32, #tpu.memory_space<vmem>>, %arg5: memref<128x128xf32, #tpu.memory_space<vmem>>, %arg6: memref<128x128xf32, #tpu.memory_space<vmem>>, %arg7: memref<1x128xf32, #tpu.memory_space<vmem>>, %arg8: memref<1x128xf32, #tpu.memory_space<vmem>>, %arg9: memref<1x128xf32, #tpu.memory_space<vmem>>, %arg10: memref<16x128xf32, #tpu.memory_space<vmem>>) attributes {dimension_semantics = [#tpu.dimension_semantics<parallel>], iteration_bounds = array<i64: 2>, scalar_prefetch = 0 : i64, scratch_operands = 0 : i64, tpu.core_type = #tpu.core_type<tc>, window_params = [{transform_indices = @transform_0, window_bounds = array<i64: 16, 128>}, {pipeline_mode = #tpu.pipeline_mode<synchronous>, transform_indices = @transform_1, window_bounds = array<i64: 128, 128>}, {pipeline_mode = #tpu.pipeline_mode<synchronous>, transform_indices = @transform_2, window_bounds = array<i64: 128, 128>}, {pipeline_mode = #tpu.pipeline_mode<synchronous>, transform_indices = @transform_3, window_bounds = array<i64: 128, 128>}, {pipeline_mode = #tpu.pipeline_mode<synchronous>, transform_indices = @transform_4, window_bounds = array<i64: 128, 128>}, {pipeline_mode = #tpu.pipeline_mode<synchronous>, transform_indices = @transform_5, window_bounds = array<i64: 128, 128>}, {pipeline_mode = #tpu.pipeline_mode<synchronous>, transform_indices = @transform_6, window_bounds = array<i64: 1, 128>}, {pipeline_mode = #tpu.pipeline_mode<synchronous>, transform_indices = @transform_7, window_bounds = array<i64: 1, 128>}, {pipeline_mode = #tpu.pipeline_mode<synchronous>, transform_indices = @transform_8, window_bounds = array<i64: 1, 128>}, {transform_indices = @transform_9, window_bounds = array<i64: 16, 128>}]} {
    %c0 = arith.constant 0 : index
    %c0_0 = arith.constant 0 : index
    %0 = vector.load %arg1[%c0, %c0_0] : memref<16x128xf32, #tpu.memory_space<vmem>>, vector<16x128xf32>
    %c0_1 = arith.constant 0 : index
    %c0_2 = arith.constant 0 : index
    %1 = vector.load %arg2[%c0_1, %c0_2] : memref<128x128xf32, #tpu.memory_space<vmem>>, vector<128x128xf32>
    %cst = arith.constant dense<0.000000e+00> : vector<16x128xf32>
    %2 = tpu.matmul %0, %1, %cst {dimension_numbers = #tpu.dot_dimension_numbers<[1], [0], [0], [1], [0, 0, 1, 1], [], []>} : vector<16x128xf32>, vector<128x128xf32>, vector<16x128xf32> -> vector<16x128xf32>
    %c0_3 = arith.constant 0 : index
    %c0_4 = arith.constant 0 : index
    %3 = vector.load %arg7[%c0_3, %c0_4] : memref<1x128xf32, #tpu.memory_space<vmem>>, vector<1x128xf32>
    %4 = vector.broadcast %3 : vector<1x128xf32> to vector<16x128xf32>
    %5 = arith.addf %2, %4 : vector<16x128xf32>
    %cst_5 = arith.constant 0.000000e+00 : f32
    %6 = vector.broadcast %cst_5 : f32 to vector<16x128xf32>
    %7 = arith.maximumf %5, %6 : vector<16x128xf32>
    %8 = tpu.iota {dimensions = array<i32: 0>} : vector<16x1xi32>
    %c16_i32 = arith.constant 16 : i32
    %c0_i32 = arith.constant 0 : i32
    %9 = arith.cmpi eq, %c16_i32, %c0_i32 : i32
    %c1_i32 = arith.constant 1 : i32
    %10 = arith.select %9, %c1_i32, %c16_i32 : i32
    %11 = vector.broadcast %10 : i32 to vector<16x1xi32>
    %12 = arith.remsi %8, %11 : vector<16x1xi32>
    %c0_i32_6 = arith.constant 0 : i32
    %13 = vector.broadcast %c0_i32_6 : i32 to vector<16x1xi32>
    %14 = arith.cmpi ne, %12, %13 : vector<16x1xi32>
    %c0_i32_7 = arith.constant 0 : i32
    %15 = vector.broadcast %c0_i32_7 : i32 to vector<16x1xi32>
    %16 = arith.cmpi slt, %12, %15 : vector<16x1xi32>
    %c0_i32_8 = arith.constant 0 : i32
    %17 = arith.cmpi slt, %10, %c0_i32_8 : i32
    %18 = vector.broadcast %17 : i1 to vector<16x1xi1>
    %19 = vector.broadcast %18 : vector<16x1xi1> to vector<16x1xi1>
    %20 = arith.xori %16, %19 : vector<16x1xi1>
    %21 = arith.andi %20, %14 : vector<16x1xi1>
    %22 = vector.broadcast %10 : i32 to vector<16x1xi32>
    %23 = arith.addi %12, %22 : vector<16x1xi32>
    %24 = arith.select %21, %23, %12 : vector<16x1xi1>, vector<16x1xi32>
    %c0_i32_9 = arith.constant 0 : i32
    %25 = vector.broadcast %c0_i32_9 : i32 to vector<16x1xi32>
    %26 = arith.cmpi eq, %24, %25 : vector<16x1xi32>
    %c1_i32_10 = arith.constant 1 : i32
    %27 = tpu.dynamic_rotate %7 by %c1_i32_10 dim 0 : vector<16x128xf32>, i32 -> vector<16x128xf32>
    %cst_11 = arith.constant 0.000000e+00 : f32
    %28 = vector.shape_cast %26 : vector<16x1xi1> to vector<16x1xi1>
    %29 = vector.broadcast %28 : vector<16x1xi1> to vector<16x128xi1>
    %30 = vector.broadcast %cst_11 : f32 to vector<16x128xf32>
    %31 = arith.select %29, %30, %27 : vector<16x128xi1>, vector<16x128xf32>
    %c15_i32 = arith.constant 15 : i32
    %32 = vector.broadcast %c15_i32 : i32 to vector<16x1xi32>
    %33 = arith.cmpi eq, %24, %32 : vector<16x1xi32>
    %c15_i32_12 = arith.constant 15 : i32
    %34 = tpu.dynamic_rotate %7 by %c15_i32_12 dim 0 : vector<16x128xf32>, i32 -> vector<16x128xf32>
    %cst_13 = arith.constant 0.000000e+00 : f32
    %35 = vector.shape_cast %33 : vector<16x1xi1> to vector<16x1xi1>
    %36 = vector.broadcast %35 : vector<16x1xi1> to vector<16x128xi1>
    %37 = vector.broadcast %cst_13 : f32 to vector<16x128xf32>
    %38 = arith.select %36, %37, %34 : vector<16x128xi1>, vector<16x128xf32>
    %c0_14 = arith.constant 0 : index
    %c0_15 = arith.constant 0 : index
    %39 = vector.load %arg3[%c0_14, %c0_15] : memref<128x128xf32, #tpu.memory_space<vmem>>, vector<128x128xf32>
    %cst_16 = arith.constant dense<0.000000e+00> : vector<16x128xf32>
    %40 = tpu.matmul %31, %39, %cst_16 {dimension_numbers = #tpu.dot_dimension_numbers<[1], [0], [0], [1], [0, 0, 1, 1], [], []>} : vector<16x128xf32>, vector<128x128xf32>, vector<16x128xf32> -> vector<16x128xf32>
    %c0_17 = arith.constant 0 : index
    %c0_18 = arith.constant 0 : index
    %41 = vector.load %arg4[%c0_17, %c0_18] : memref<128x128xf32, #tpu.memory_space<vmem>>, vector<128x128xf32>
    %cst_19 = arith.constant dense<0.000000e+00> : vector<16x128xf32>
    %42 = tpu.matmul %7, %41, %cst_19 {dimension_numbers = #tpu.dot_dimension_numbers<[1], [0], [0], [1], [0, 0, 1, 1], [], []>} : vector<16x128xf32>, vector<128x128xf32>, vector<16x128xf32> -> vector<16x128xf32>
    %43 = arith.addf %40, %42 : vector<16x128xf32>
    %c0_20 = arith.constant 0 : index
    %c0_21 = arith.constant 0 : index
    %44 = vector.load %arg5[%c0_20, %c0_21] : memref<128x128xf32, #tpu.memory_space<vmem>>, vector<128x128xf32>
    %cst_22 = arith.constant dense<0.000000e+00> : vector<16x128xf32>
    %45 = tpu.matmul %38, %44, %cst_22 {dimension_numbers = #tpu.dot_dimension_numbers<[1], [0], [0], [1], [0, 0, 1, 1], [], []>} : vector<16x128xf32>, vector<128x128xf32>, vector<16x128xf32> -> vector<16x128xf32>
    %46 = arith.addf %43, %45 : vector<16x128xf32>
    %c0_23 = arith.constant 0 : index
    %c0_24 = arith.constant 0 : index
    %47 = vector.load %arg8[%c0_23, %c0_24] : memref<1x128xf32, #tpu.memory_space<vmem>>, vector<1x128xf32>
    %48 = vector.broadcast %47 : vector<1x128xf32> to vector<16x128xf32>
    %49 = arith.addf %46, %48 : vector<16x128xf32>
    %cst_25 = arith.constant 0.000000e+00 : f32
    %50 = vector.broadcast %cst_25 : f32 to vector<16x128xf32>
    %51 = arith.maximumf %49, %50 : vector<16x128xf32>
    %c0_26 = arith.constant 0 : index
    %c0_27 = arith.constant 0 : index
    %52 = vector.load %arg6[%c0_26, %c0_27] : memref<128x128xf32, #tpu.memory_space<vmem>>, vector<128x128xf32>
    %cst_28 = arith.constant dense<0.000000e+00> : vector<16x128xf32>
    %53 = tpu.matmul %51, %52, %cst_28 {dimension_numbers = #tpu.dot_dimension_numbers<[1], [0], [0], [1], [0, 0, 1, 1], [], []>} : vector<16x128xf32>, vector<128x128xf32>, vector<16x128xf32> -> vector<16x128xf32>
    %c0_29 = arith.constant 0 : index
    %c0_30 = arith.constant 0 : index
    %54 = vector.load %arg9[%c0_29, %c0_30] : memref<1x128xf32, #tpu.memory_space<vmem>>, vector<1x128xf32>
    %55 = vector.broadcast %54 : vector<1x128xf32> to vector<16x128xf32>
    %56 = arith.addf %53, %55 : vector<16x128xf32>
    %c0_31 = arith.constant 0 : index
    %c0_32 = arith.constant 0 : index
    %57 = vector.load %arg1[%c0_31, %c0_32] : memref<16x128xf32, #tpu.memory_space<vmem>>, vector<16x128xf32>
    %58 = arith.addf %56, %57 : vector<16x128xf32>
    %cst_33 = arith.constant 0.000000e+00 : f32
    %59 = vector.broadcast %cst_33 : f32 to vector<16x128xf32>
    %60 = arith.maximumf %58, %59 : vector<16x128xf32>
    %c0_34 = arith.constant 0 : index
    %c0_35 = arith.constant 0 : index
    %61 = vector.load %arg10[%c0_34, %c0_35] : memref<16x128xf32, #tpu.memory_space<vmem>>, vector<16x128xf32>
    tpu.vector_store %arg10[%c0_34, %c0_35], %60 {strides = array<i32>} : memref<16x128xf32, #tpu.memory_space<vmem>>, vector<16x128xf32>,
    return
  }
  func.func @transform_0(%arg0: i32) -> (i32, i32) {
    %c0_i32 = arith.constant 0 : i32
    %c0_i32_0 = arith.constant 0 : i32
    return %arg0, %c0_i32 : i32, i32
  }
  func.func @transform_1(%arg0: i32) -> (i32, i32) {
    %c0_i32 = arith.constant 0 : i32
    %c0_i32_0 = arith.constant 0 : i32
    %c0_i32_1 = arith.constant 0 : i32
    return %c0_i32, %c0_i32_0 : i32, i32
  }
  func.func @transform_2(%arg0: i32) -> (i32, i32) {
    %c0_i32 = arith.constant 0 : i32
    %c0_i32_0 = arith.constant 0 : i32
    %c0_i32_1 = arith.constant 0 : i32
    return %c0_i32, %c0_i32_0 : i32, i32
  }
  func.func @transform_3(%arg0: i32) -> (i32, i32) {
    %c0_i32 = arith.constant 0 : i32
    %c0_i32_0 = arith.constant 0 : i32
    %c0_i32_1 = arith.constant 0 : i32
    return %c0_i32, %c0_i32_0 : i32, i32
  }
  func.func @transform_4(%arg0: i32) -> (i32, i32) {
    %c0_i32 = arith.constant 0 : i32
    %c0_i32_0 = arith.constant 0 : i32
    %c0_i32_1 = arith.constant 0 : i32
    return %c0_i32, %c0_i32_0 : i32, i32
  }
  func.func @transform_5(%arg0: i32) -> (i32, i32) {
    %c0_i32 = arith.constant 0 : i32
    %c0_i32_0 = arith.constant 0 : i32
    %c0_i32_1 = arith.constant 0 : i32
    return %c0_i32, %c0_i32_0 : i32, i32
  }
  func.func @transform_6(%arg0: i32) -> (i32, i32) {
    %c0_i32 = arith.constant 0 : i32
    %c0_i32_0 = arith.constant 0 : i32
    %c0_i32_1 = arith.constant 0 : i32
    return %c0_i32, %c0_i32_0 : i32, i32
  }
  func.func @transform_7(%arg0: i32) -> (i32, i32) {
    %c0_i32 = arith.constant 0 : i32
    %c0_i32_0 = arith.constant 0 : i32
    %c0_i32_1 = arith.constant 0 : i32
    return %c0_i32, %c0_i32_0 : i32, i32
  }
  func.func @transform_8(%arg0: i32) -> (i32, i32) {
    %c0_i32 = arith.constant 0 : i32
    %c0_i32_0 = arith.constant 0 : i32
    %c0_i32_1 = arith.constant 0 : i32
    return %c0_i32, %c0_i32_0 : i32, i32
  }
  func.func @transform_9(%arg0: i32) -> (i32, i32) {
    %c0_i32 = arith.constant 0 : i32
    %c0_i32_0 = arith.constant 0 : i32
    return %arg0, %c0_i32 : i32, i32
  }
}

</mosaic_0001>

<llo_original>
// kernel: tpu_custom_call.1
$region0: #{tpu_custom_call.1}
  #allocation0 [shape = 'u32[]', space=smem, size = 0x4, offset = 0x4, fixed_abs, tag = 'smem constant byte address 0x4 - core index']
  #allocation1 [shape = 'u32[144,128]{1,0:T(1,128)}', space=vmem, size = 0x12000, scoped, tag = 'internal scratch']
  %s0 = inlined_call_operand.hbm [shape: f32[32,128], index: 0, kind: input, shape index: {}]
  %s1 = inlined_call_operand.hbm [shape: f32[128,128], index: 1, kind: input, shape index: {}]
  %s2 = inlined_call_operand.hbm [shape: f32[128,128], index: 2, kind: input, shape index: {}]
  %s3 = inlined_call_operand.hbm [shape: f32[128,128], index: 3, kind: input, shape index: {}]
  %s4 = inlined_call_operand.hbm [shape: f32[128,128], index: 4, kind: input, shape index: {}]
  %s5 = inlined_call_operand.hbm [shape: f32[128,128], index: 5, kind: input, shape index: {}]
  %s6 = inlined_call_operand.vmem [shape: f32[1,128], index: 6, kind: input, shape index: {}]
  %s7 = inlined_call_operand.vmem [shape: f32[1,128], index: 7, kind: input, shape index: {}]
  %s8 = inlined_call_operand.vmem [shape: f32[1,128], index: 8, kind: input, shape index: {}]
  %s9 = inlined_call_operand.hbm [shape: f32[32,128], index: 9, kind: output, shape index: {}]
  %s10 = sld [smem:[#allocation0]]
  $region93: #{tpu_custom_call.1} parent=0
    _
  %s12 = ssub.s32 1, %s10
  %s13 = scalar_select 0, %s12, %s10
  $region1: #{tpu_custom_call.1} parent=0
    #allocation2 [shape = 'u8[16384]{0}', space=vmem, size = 0x4000, scoped, tag = 'input window, operand 0']
    #allocation3 [shape = 's32[2]{0}', space=sflag, size = 0x8, scoped, tag = 'scoped memory for tpu_custom_call.1']
    #allocation4 [shape = 's32[2]{0}', space=sflag, size = 0x8, scoped, tag = 'scoped memory for tpu_custom_call.1']
    #allocation5 [shape = 'u8[65536]{0}', space=vmem, size = 0x10000, scoped, tag = 'input window, operand 1, single buffered']
    #allocation6 [shape = 's32[1]{0}', space=sflag, size = 0x4, scoped, tag = 'scoped memory for tpu_custom_call.1']
    #allocation7 [shape = 'u8[65536]{0}', space=vmem, size = 0x10000, scoped, tag = 'input window, operand 2, single buffered']
    #allocation8 [shape = 'u8[65536]{0}', space=vmem, size = 0x10000, scoped, tag = 'input window, operand 3, single buffered']
    #allocation9 [shape = 's32[1]{0}', space=sflag, size = 0x4, scoped, tag = 'scoped memory for tpu_custom_call.1']
    #allocation10 [shape = 'u8[65536]{0}', space=vmem, size = 0x10000, scoped, tag = 'input window, operand 4, single buffered']
    #allocation11 [shape = 'u8[65536]{0}', space=vmem, size = 0x10000, scoped, tag = 'input window, operand 5, single buffered']
    #allocation12 [shape = 's32[1]{0}', space=sflag, size = 0x4, scoped, tag = 'scoped memory for tpu_custom_call.1']
    #allocation13 [shape = 'u8[16384]{0}', space=vmem, size = 0x4000, scoped, tag = 'output window, operand 0']
    %14 = vsyncpa [#allocation3], 0
    %s15 = scalar_lea.sflag [#allocation3], 1
    %16 = vsyncpa %s15, 0
    %17 = vsyncpa [#allocation6], 0
    %18 = vsyncpa [#allocation9], 0
    %19 = vsyncpa [#allocation12], 0
    %20 = vsyncpa [#allocation4], 0
    %s21 = scalar_lea.sflag [#allocation4], 1
    %22 = vsyncpa %s21, 0
    loop: start=0, step=1, limit=4
    $region2: #{tpu_custom_call.1} parent=1 // loop_pre_header
      _
    $region3: #{tpu_custom_call.1} parent=1 // loop_header
      %s24 = sphi 0, %s28
      %p25 = scmp.ge.s32.totalorder %s24, 4
      %s34 = sphi 0, %s36
      %s37 = sphi 0, %s34
      %s38 = sphi 0, %s37
      %s54 = sphi 0, %s38
      %s58 = sphi 0, %s58
      %s60 = sphi 0, %s58
      %s61 = sphi 0, %s60
      %s75 = sphi 0, %s61
      %s79 = sphi 0, %s79
      %s81 = sphi 0, %s79
      %s82 = sphi 0, %s81
      %s96 = sphi 0, %s82
      %s100 = sphi 0, %s100
      %s102 = sphi 0, %s100
      %s103 = sphi 0, %s102
      %s117 = sphi 0, %s103
      %s121 = sphi 0, %s121
      %s123 = sphi 0, %s121
      %s124 = sphi 0, %s123
      %s138 = sphi 0, %s124
      %s142 = sphi 0, %s142
      %s144 = sphi 0, %s142
      %s145 = sphi 0, %s144
      %s159 = sphi 0, %s145
      %s163 = sphi 0, %s163
      %s165 = sphi 0, %s163
      %s166 = sphi 0, %s165
      %s180 = sphi 0, %s166
      %s184 = sphi 0, %s184
      %s186 = sphi 0, %s184
      %s187 = sphi 0, %s186
      %s201 = sphi 0, %s187
      %s205 = sphi 0, %s205
      %s207 = sphi 0, %s205
      %s208 = sphi 0, %s207
      %s222 = sphi 0, %s208
      %s228 = sphi 0, %s230
      %s231 = sphi 0, %s228
      %s232 = sphi 0, %s231
      %s248 = sphi 0, %s232
    $region4: #{tpu_custom_call.1} parent=1 // loop_header_branch
      %27 = sbr.rel (%p25) target = $region8
    $region5: #{tpu_custom_call.1} parent=1 // loop_body
      %s29 = ssub.s32 %s24, 1
      %s30 = ssub.s32 %s24, 2
      %s31 = sadd.s32 %s24, 1
      %s32 = ssub.s32 %s24, %s31
      %p33 = scmp.eq.s32.totalorder %s32, 0
      %s35 = sadd.s32 %s34, 1
      %s36 = scalar_select %p33, %s34, %s35
      %p39 = pneg %p33
      %p40 = scmp.eq.s32.totalorder %s24, 1
      %p41 = por %p39, %p40
      %p42 = scmp.ne.s32.totalorder %s34, %s37
      %p43 = scmp.eq.s32.totalorder %s24, 0
      %p44 = por %p42, %p43
      %p45 = scmp.ne.s32.totalorder %s34, %s37
      %p46 = scmp.eq.s32.totalorder %s29, 1
      %p47 = por %p45, %p46
      %p48 = scmp.ne.s32.totalorder %s37, %s38
      %p49 = scmp.eq.s32.totalorder %s29, 0
      %p50 = por %p48, %p49
      %p51 = scmp.ne.s32.totalorder %s37, %s38
      %p52 = scmp.eq.s32.totalorder %s30, 1
      %p53 = por %p51, %p52
      %p55 = scmp.ne.s32.totalorder %s38, %s54
      %p56 = scmp.eq.s32.totalorder %s30, 0
      %p57 = por %p55, %p56
      %s59 = sadd.s32 %s58, 1
      %p62 = scmp.eq.s32.totalorder %s24, 1
      %p63 = scmp.ne.s32.totalorder %s58, %s60
      %p64 = scmp.eq.s32.totalorder %s24, 0
      %p65 = por %p63, %p64
      %p66 = scmp.ne.s32.totalorder %s58, %s60
      %p67 = scmp.eq.s32.totalorder %s29, 1
      %p68 = por %p66, %p67
      %p69 = scmp.ne.s32.totalorder %s60, %s61
      %p70 = scmp.eq.s32.totalorder %s29, 0
      %p71 = por %p69, %p70
      %p72 = scmp.ne.s32.totalorder %s60, %s61
      %p73 = scmp.eq.s32.totalorder %s30, 1
      %p74 = por %p72, %p73
      %p76 = scmp.ne.s32.totalorder %s61, %s75
      %p77 = scmp.eq.s32.totalorder %s30, 0
      %p78 = por %p76, %p77
      %s80 = sadd.s32 %s79, 1
      %p83 = scmp.eq.s32.totalorder %s24, 1
      %p84 = scmp.ne.s32.totalorder %s79, %s81
      %p85 = scmp.eq.s32.totalorder %s24, 0
      %p86 = por %p84, %p85
      %p87 = scmp.ne.s32.totalorder %s79, %s81
      %p88 = scmp.eq.s32.totalorder %s29, 1
      %p89 = por %p87, %p88
      %p90 = scmp.ne.s32.totalorder %s81, %s82
      %p91 = scmp.eq.s32.totalorder %s29, 0
      %p92 = por %p90, %p91
      %p93 = scmp.ne.s32.totalorder %s81, %s82
      %p94 = scmp.eq.s32.totalorder %s30, 1
      %p95 = por %p93, %p94
      %p97 = scmp.ne.s32.totalorder %s82, %s96
      %p98 = scmp.eq.s32.totalorder %s30, 0
      %p99 = por %p97, %p98
      %s101 = sadd.s32 %s100, 1
      %p104 = scmp.eq.s32.totalorder %s24, 1
      %p105 = scmp.ne.s32.totalorder %s100, %s102
      %p106 = scmp.eq.s32.totalorder %s24, 0
      %p107 = por %p105, %p106
      %p108 = scmp.ne.s32.totalorder %s100, %s102
      %p109 = scmp.eq.s32.totalorder %s29, 1
      %p110 = por %p108, %p109
      %p111 = scmp.ne.s32.totalorder %s102, %s103
      %p112 = scmp.eq.s32.totalorder %s29, 0
      %p113 = por %p111, %p112
      %p114 = scmp.ne.s32.totalorder %s102, %s103
      %p115 = scmp.eq.s32.totalorder %s30, 1
      %p116 = por %p114, %p115
      %p118 = scmp.ne.s32.totalorder %s103, %s117
      %p119 = scmp.eq.s32.totalorder %s30, 0
      %p120 = por %p118, %p119
      %s122 = sadd.s32 %s121, 1
      %p125 = scmp.eq.s32.totalorder %s24, 1
      %p126 = scmp.ne.s32.totalorder %s121, %s123
      %p127 = scmp.eq.s32.totalorder %s24, 0
      %p128 = por %p126, %p127
      %p129 = scmp.ne.s32.totalorder %s121, %s123
      %p130 = scmp.eq.s32.totalorder %s29, 1
      %p131 = por %p129, %p130
      %p132 = scmp.ne.s32.totalorder %s123, %s124
      %p133 = scmp.eq.s32.totalorder %s29, 0
      %p134 = por %p132, %p133
      %p135 = scmp.ne.s32.totalorder %s123, %s124
      %p136 = scmp.eq.s32.totalorder %s30, 1
      %p137 = por %p135, %p136
      %p139 = scmp.ne.s32.totalorder %s124, %s138
      %p140 = scmp.eq.s32.totalorder %s30, 0
      %p141 = por %p139, %p140
      %s143 = sadd.s32 %s142, 1
      %p146 = scmp.eq.s32.totalorder %s24, 1
      %p147 = scmp.ne.s32.totalorder %s142, %s144
      %p148 = scmp.eq.s32.totalorder %s24, 0
      %p149 = por %p147, %p148
      %p150 = scmp.ne.s32.totalorder %s142, %s144
      %p151 = scmp.eq.s32.totalorder %s29, 1
      %p152 = por %p150, %p151
      %p153 = scmp.ne.s32.totalorder %s144, %s145
      %p154 = scmp.eq.s32.totalorder %s29, 0
      %p155 = por %p153, %p154
      %p156 = scmp.ne.s32.totalorder %s144, %s145
      %p157 = scmp.eq.s32.totalorder %s30, 1
      %p158 = por %p156, %p157
      %p160 = scmp.ne.s32.totalorder %s145, %s159
      %p161 = scmp.eq.s32.totalorder %s30, 0
      %p162 = por %p160, %p161
      %s164 = sadd.s32 %s163, 1
      %p167 = scmp.eq.s32.totalorder %s24, 1
      %p168 = scmp.ne.s32.totalorder %s163, %s165
      %p169 = scmp.eq.s32.totalorder %s24, 0
      %p170 = por %p168, %p169
      %p171 = scmp.ne.s32.totalorder %s163, %s165
      %p172 = scmp.eq.s32.totalorder %s29, 1
      %p173 = por %p171, %p172
      %p174 = scmp.ne.s32.totalorder %s165, %s166
      %p175 = scmp.eq.s32.totalorder %s29, 0
      %p176 = por %p174, %p175
      %p177 = scmp.ne.s32.totalorder %s165, %s166
      %p178 = scmp.eq.s32.totalorder %s30, 1
      %p179 = por %p177, %p178
      %p181 = scmp.ne.s32.totalorder %s166, %s180
      %p182 = scmp.eq.s32.totalorder %s30, 0
      %p183 = por %p181, %p182
      %s185 = sadd.s32 %s184, 1
      %p188 = scmp.eq.s32.totalorder %s24, 1
      %p189 = scmp.ne.s32.totalorder %s184, %s186
      %p190 = scmp.eq.s32.totalorder %s24, 0
      %p191 = por %p189, %p190
      %p192 = scmp.ne.s32.totalorder %s184, %s186
      %p193 = scmp.eq.s32.totalorder %s29, 1
      %p194 = por %p192, %p193
      %p195 = scmp.ne.s32.totalorder %s186, %s187
      %p196 = scmp.eq.s32.totalorder %s29, 0
      %p197 = por %p195, %p196
      %p198 = scmp.ne.s32.totalorder %s186, %s187
      %p199 = scmp.eq.s32.totalorder %s30, 1
      %p200 = por %p198, %p199
      %p202 = scmp.ne.s32.totalorder %s187, %s201
      %p203 = scmp.eq.s32.totalorder %s30, 0
      %p204 = por %p202, %p203
      %s206 = sadd.s32 %s205, 1
      %p209 = scmp.eq.s32.totalorder %s24, 1
      %p210 = scmp.ne.s32.totalorder %s205, %s207
      %p211 = scmp.eq.s32.totalorder %s24, 0
      %p212 = por %p210, %p211
      %p213 = scmp.ne.s32.totalorder %s205, %s207
      %p214 = scmp.eq.s32.totalorder %s29, 1
      %p215 = por %p213, %p214
      %p216 = scmp.ne.s32.totalorder %s207, %s208
      %p217 = scmp.eq.s32.totalorder %s29, 0
      %p218 = por %p216, %p217
      %p219 = scmp.ne.s32.totalorder %s207, %s208
      %p220 = scmp.eq.s32.totalorder %s30, 1
      %p221 = por %p219, %p220
      %p223 = scmp.ne.s32.totalorder %s208, %s222
      %p224 = scmp.eq.s32.totalorder %s30, 0
      %p225 = por %p223, %p224
      %s226 = ssub.s32 %s24, %s31
      %p227 = scmp.eq.s32.totalorder %s226, 0
      %s229 = sadd.s32 %s228, 1
      %s230 = scalar_select %p227, %s228, %s229
      %p233 = pneg %p227
      %p234 = scmp.eq.s32.totalorder %s24, 1
      %p235 = por %p233, %p234
      %p236 = scmp.ne.s32.totalorder %s228, %s231
      %p237 = scmp.eq.s32.totalorder %s24, 0
      %p238 = por %p236, %p237
      %p239 = scmp.ne.s32.totalorder %s228, %s231
      %p240 = scmp.eq.s32.totalorder %s29, 1
      %p241 = por %p239, %p240
      %p242 = scmp.ne.s32.totalorder %s231, %s232
      %p243 = scmp.eq.s32.totalorder %s29, 0
      %p244 = por %p242, %p243
      %p245 = scmp.ne.s32.totalorder %s231, %s232
      %p246 = scmp.eq.s32.totalorder %s30, 1
      %p247 = por %p245, %p246
      %p249 = scmp.ne.s32.totalorder %s232, %s248
      %p250 = scmp.eq.s32.totalorder %s30, 0
      %p251 = por %p249, %p250
      %p252 = scmp.le.s32.totalorder 1, %s24
      %p253 = scmp.lt.s32.totalorder %s24, 3
      %p254 = pnand %p252, %p253
      %p255 = pneg %p254
      // Predicated region
      $region9: #{tpu_custom_call.1} parent=5 // pred_check
        _
      $region10: #{tpu_custom_call.1} parent=5 // pred_check_branch
        %257 = sbr.rel (%p254) target = $region12
      $region11: #{tpu_custom_call.1} parent=5 // pred_region
        %s258 = ssub.s32 %s24, 1
        // Predicated region
        $region13: #{tpu_custom_call.1} parent=11 // pred_check
          %p259 = pneg %p71
        $region14: #{tpu_custom_call.1} parent=11 // pred_check_branch
          %261 = sbr.rel (%p259) target = $region16
        $region15: #{tpu_custom_call.1} parent=11 // pred_region
          %s263 = ssub.s32 2048, 2048
          %264 = vsyncadd [#allocation6], %s263
          %s265 = sshll.u32 [#allocation5], 4
          %s266 = int_to_ptr.vmem [resolvable:$true] %s265
          %271 = dma.hbm_to_vmem [thread:$0]  %s1, 2048, %s266, [#allocation6], 128, 128, 8
        $region16: #{tpu_custom_call.1} parent=11 // pred_fallthru
          _
        // Predicated region
        $region17: #{tpu_custom_call.1} parent=11 // pred_check
          %p272 = pneg %p92
        $region18: #{tpu_custom_call.1} parent=11 // pred_check_branch
          %274 = sbr.rel (%p272) target = $region20
        $region19: #{tpu_custom_call.1} parent=11 // pred_region
          %s276 = ssub.s32 2048, 2048
          %277 = vsyncadd [#allocation6], %s276
          %s278 = sshll.u32 [#allocation7], 4
          %s279 = int_to_ptr.vmem [resolvable:$true] %s278
          %284 = dma.hbm_to_vmem [thread:$0]  %s2, 2048, %s279, [#allocation6], 128, 128, 8
        $region20: #{tpu_custom_call.1} parent=11 // pred_fallthru
          _
        // Predicated region
        $region21: #{tpu_custom_call.1} parent=11 // pred_check
          %p285 = pneg %p113
        $region22: #{tpu_custom_call.1} parent=11 // pred_check_branch
          %287 = sbr.rel (%p285) target = $region24
        $region23: #{tpu_custom_call.1} parent=11 // pred_region
          %s289 = ssub.s32 2048, 2048
          %290 = vsyncadd [#allocation9], %s289
          %s291 = sshll.u32 [#allocation8], 4
          %s292 = int_to_ptr.vmem [resolvable:$true] %s291
          %297 = dma.hbm_to_vmem [thread:$0]  %s3, 2048, %s292, [#allocation9], 128, 128, 8
        $region24: #{tpu_custom_call.1} parent=11 // pred_fallthru
          _
        // Predicated region
        $region25: #{tpu_custom_call.1} parent=11 // pred_check
          %p298 = pneg %p134
        $region26: #{tpu_custom_call.1} parent=11 // pred_check_branch
          %300 = sbr.rel (%p298) target = $region28
        $region27: #{tpu_custom_call.1} parent=11 // pred_region
          %s302 = ssub.s32 2048, 2048
          %303 = vsyncadd [#allocation9], %s302
          %s304 = sshll.u32 [#allocation10], 4
          %s305 = int_to_ptr.vmem [resolvable:$true] %s304
          %310 = dma.hbm_to_vmem [thread:$0]  %s4, 2048, %s305, [#allocation9], 128, 128, 8
        $region28: #{tpu_custom_call.1} parent=11 // pred_fallthru
          _
        // Predicated region
        $region29: #{tpu_custom_call.1} parent=11 // pred_check
          %p311 = pneg %p155
        $region30: #{tpu_custom_call.1} parent=11 // pred_check_branch
          %313 = sbr.rel (%p311) target = $region32
        $region31: #{tpu_custom_call.1} parent=11 // pred_region
          %s315 = ssub.s32 2048, 2048
          %316 = vsyncadd [#allocation12], %s315
          %s317 = sshll.u32 [#allocation11], 4
          %s318 = int_to_ptr.vmem [resolvable:$true] %s317
          %323 = dma.hbm_to_vmem [thread:$0]  %s5, 2048, %s318, [#allocation12], 128, 128, 8
        $region32: #{tpu_custom_call.1} parent=11 // pred_fallthru
          _
        // Predicated region
        $region33: #{tpu_custom_call.1} parent=11 // pred_check
          %p324 = pneg %p176
        $region34: #{tpu_custom_call.1} parent=11 // pred_check_branch
          %326 = sbr.rel (%p324) target = $region36
        $region35: #{tpu_custom_call.1} parent=11 // pred_region
          _
        $region36: #{tpu_custom_call.1} parent=11 // pred_fallthru
          _
        // Predicated region
        $region37: #{tpu_custom_call.1} parent=11 // pred_check
          %p327 = pneg %p197
        $region38: #{tpu_custom_call.1} parent=11 // pred_check_branch
          %329 = sbr.rel (%p327) target = $region40
        $region39: #{tpu_custom_call.1} parent=11 // pred_region
          _
        $region40: #{tpu_custom_call.1} parent=11 // pred_fallthru
          _
        // Predicated region
        $region41: #{tpu_custom_call.1} parent=11 // pred_check
          %p330 = pneg %p218
        $region42: #{tpu_custom_call.1} parent=11 // pred_check_branch
          %332 = sbr.rel (%p330) target = $region44
        $region43: #{tpu_custom_call.1} parent=11 // pred_region
          _
        $region44: #{tpu_custom_call.1} parent=11 // pred_fallthru
          _
      $region12: #{tpu_custom_call.1} parent=5 // pred_fallthru
        _
      %p333 = scmp.lt.s32.totalorder %s24, 2
      // Predicated region
      $region45: #{tpu_custom_call.1} parent=5 // pred_check
        %p334 = pneg %p333
      $region46: #{tpu_custom_call.1} parent=5 // pred_check_branch
        %336 = sbr.rel (%p334) target = $region48
      $region47: #{tpu_custom_call.1} parent=5 // pred_region
        // Predicated region
        $region49: #{tpu_custom_call.1} parent=47 // pred_check
          %p337 = pneg %p44
        $region50: #{tpu_custom_call.1} parent=47 // pred_check_branch
          %339 = sbr.rel (%p337) target = $region52
        $region51: #{tpu_custom_call.1} parent=47 // pred_region
          %s340 = sand.u32 %s34, 1
          %s341 = scalar_lea.sflag [#allocation3], %s340
          %s342 = sand.u32 %s34, 1
          %s343 = smul.addr %s342, 16
          %s344 = scalar_lea.vmem [#allocation2], %s343
          %s345 = smul.u32 2, %s24
          %s347 = ssub.s32 256, 256
          %348 = vsyncadd %s341, %s347
          %s349 = smul.addr %s345, 128
          %s350 = scalar_lea.hbm %s0, %s349
          %s351 = sshll.u32 %s344, 4
          %s352 = int_to_ptr.vmem [resolvable:$true] %s351
          %357 = dma.hbm_to_vmem [thread:$0]  %s350, 256, %s352, %s341, 128, 128, 8
        $region52: #{tpu_custom_call.1} parent=47 // pred_fallthru
          _
      $region48: #{tpu_custom_call.1} parent=5 // pred_fallthru
        _
      %p358 = scmp.le.s32.totalorder 1, %s24
      %p359 = scmp.lt.s32.totalorder %s24, 3
      %p360 = pnand %p358, %p359
      %p361 = pneg %p360
      // Predicated region
      $region53: #{tpu_custom_call.1} parent=5 // pred_check
        _
      $region54: #{tpu_custom_call.1} parent=5 // pred_check_branch
        %363 = sbr.rel (%p360) target = $region56
      $region55: #{tpu_custom_call.1} parent=5 // pred_region
        %s364 = ssub.s32 %s24, 1
        %s365 = sand.u32 %s37, 1
        %s366 = scalar_lea.sflag [#allocation3], %s365
        %s367 = sand.u32 %s37, 1
        %s368 = smul.addr %s367, 16
        %s369 = scalar_lea.vmem [#allocation2], %s368
        // Predicated region
        $region57: #{tpu_custom_call.1} parent=55 // pred_check
          %p370 = pneg %p50
        $region58: #{tpu_custom_call.1} parent=55 // pred_check_branch
          %372 = sbr.rel (%p370) target = $region60
        $region59: #{tpu_custom_call.1} parent=55 // pred_region
          %373 = dma.done %s366, 256
        $region60: #{tpu_custom_call.1} parent=55 // pred_fallthru
          _
        // Predicated region
        $region61: #{tpu_custom_call.1} parent=55 // pred_check
          %p374 = pneg %p71
        $region62: #{tpu_custom_call.1} parent=55 // pred_check_branch
          %376 = sbr.rel (%p374) target = $region64
        $region63: #{tpu_custom_call.1} parent=55 // pred_region
          %377 = dma.done [#allocation6], 2048
        $region64: #{tpu_custom_call.1} parent=55 // pred_fallthru
          _
        // Predicated region
        $region65: #{tpu_custom_call.1} parent=55 // pred_check
          %p378 = pneg %p92
        $region66: #{tpu_custom_call.1} parent=55 // pred_check_branch
          %380 = sbr.rel (%p378) target = $region68
        $region67: #{tpu_custom_call.1} parent=55 // pred_region
          %381 = dma.done [#allocation6], 2048
        $region68: #{tpu_custom_call.1} parent=55 // pred_fallthru
          _
        // Predicated region
        $region69: #{tpu_custom_call.1} parent=55 // pred_check
          %p382 = pneg %p113
        $region70: #{tpu_custom_call.1} parent=55 // pred_check_branch
          %384 = sbr.rel (%p382) target = $region72
        $region71: #{tpu_custom_call.1} parent=55 // pred_region
          %385 = dma.done [#allocation9], 2048
        $region72: #{tpu_custom_call.1} parent=55 // pred_fallthru
          _
        // Predicated region
        $region73: #{tpu_custom_call.1} parent=55 // pred_check
          %p386 = pneg %p134
        $region74: #{tpu_custom_call.1} parent=55 // pred_check_branch
          %388 = sbr.rel (%p386) target = $region76
        $region75: #{tpu_custom_call.1} parent=55 // pred_region
          %389 = dma.done [#allocation9], 2048
        $region76: #{tpu_custom_call.1} parent=55 // pred_fallthru
          _
        // Predicated region
        $region77: #{tpu_custom_call.1} parent=55 // pred_check
          %p390 = pneg %p155
        $region78: #{tpu_custom_call.1} parent=55 // pred_check_branch
          %392 = sbr.rel (%p390) target = $region80
        $region79: #{tpu_custom_call.1} parent=55 // pred_region
          %393 = dma.done [#allocation12], 2048
        $region80: #{tpu_custom_call.1} parent=55 // pred_fallthru
          _
        %s394 = sand.u32 %s37, 1
        %s395 = scalar_lea.sflag [#allocation3], %s394
        %s396 = sand.u32 %s37, 1
        %s397 = smul.addr %s396, 16
        %s398 = scalar_lea.vmem [#allocation2], %s397
        %p399 = pneg %p50
        %p400 = pneg %p47
        %p401 = pneg %p71
        %p402 = pneg %p68
        %p403 = pneg %p92
        %p404 = pneg %p89
        %p405 = pneg %p113
        %p406 = pneg %p110
        %p407 = pneg %p134
        %p408 = pneg %p131
        %p409 = pneg %p155
        %p410 = pneg %p152
        %p411 = pneg %p176
        %p412 = pneg %p173
        %p413 = pneg %p197
        %p414 = pneg %p194
        %p415 = pneg %p218
        %p416 = pneg %p215
        %p417 = pneg %p244
        %p418 = pneg %p241
        %s419 = sand.u32 %s231, 1
        %s420 = scalar_lea.sflag [#allocation4], %s419
        %s421 = sand.u32 %s231, 1
        %s422 = smul.addr %s421, 16
        %s423 = scalar_lea.vmem [#allocation13], %s422
        %s424 = smul.u32 2, %s29
        %s425 = smul.u32 2, %s29
        %v426 = vld [vmem:[%s369] sm:$0xff]
        %v427 = vld [vmem:[%s369 + $0x8] sm:$0xff]
        %v428 = vld [vmem:[#allocation5] sm:$0xff]
        %v429 = vld [vmem:[#allocation5 + $0x8] sm:$0xff]
        %v430 = vld [vmem:[#allocation5 + $0x10] sm:$0xff]
        %v431 = vld [vmem:[#allocation5 + $0x18] sm:$0xff]
        %v432 = vld [vmem:[#allocation5 + $0x20] sm:$0xff]
        %v433 = vld [vmem:[#allocation5 + $0x28] sm:$0xff]
        %v434 = vld [vmem:[#allocation5 + $0x30] sm:$0xff]
        %v435 = vld [vmem:[#allocation5 + $0x38] sm:$0xff]
        %v436 = vld [vmem:[#allocation5 + $0x40] sm:$0xff]
        %v437 = vld [vmem:[#allocation5 + $0x48] sm:$0xff]
        %v438 = vld [vmem:[#allocation5 + $0x50] sm:$0xff]
        %v439 = vld [vmem:[#allocation5 + $0x58] sm:$0xff]
        %v440 = vld [vmem:[#allocation5 + $0x60] sm:$0xff]
        %v441 = vld [vmem:[#allocation5 + $0x68] sm:$0xff]
        %v442 = vld [vmem:[#allocation5 + $0x70] sm:$0xff]
        %v443 = vld [vmem:[#allocation5 + $0x78] sm:$0xff]
        %v444 = vld [vmem:[%s6] sm:$0x1]
        %v446 = vlaneseq
        %v447 = vshrl.u32 %v446, 7
        %v448 = vsub.s32 0, %v447
        %v449 = vrot.slane %v444, %v448
        %451 = vmatprep.subr.mxu0 0.0
        %452 = vmatpush1.msra.mxu0 %v428
        %453 = vmatprep.subr.mxu0 0.0
        %454 = vmatpush1.msra.mxu0 %v429
        %455 = vmatprep.subr.mxu0 0.0
        %456 = vmatpush1.msra.mxu0 %v430
        %457 = vmatprep.subr.mxu0 0.0
        %458 = vmatpush1.msra.mxu0 %v431
        %459 = vmatprep.subr.mxu0 0.0
        %460 = vmatpush1.msra.mxu0 %v432
        %461 = vmatprep.subr.mxu0 0.0
        %462 = vmatpush1.msra.mxu0 %v433
        %463 = vmatprep.subr.mxu0 0.0
        %464 = vmatpush1.msra.mxu0 %v434
        %465 = vmatprep.subr.mxu0 0.0
        %466 = vmatpush1.msra.mxu0 %v435
        %467 = vmatprep.subr.mxu0 0.0
        %468 = vmatpush1.msra.mxu0 %v436
        %469 = vmatprep.subr.mxu0 0.0
        %470 = vmatpush1.msra.mxu0 %v437
        %471 = vmatprep.subr.mxu0 0.0
        %472 = vmatpush1.msra.mxu0 %v438
        %473 = vmatprep.subr.mxu0 0.0
        %474 = vmatpush1.msra.mxu0 %v439
        %475 = vmatprep.subr.mxu0 0.0
        %476 = vmatpush1.msra.mxu0 %v440
        %477 = vmatprep.subr.mxu0 0.0
        %478 = vmatpush1.msra.mxu0 %v441
        %479 = vmatprep.subr.mxu0 0.0
        %480 = vmatpush1.msra.mxu0 %v442
        %481 = vmatprep.subr.mxu0 0.0
        %482 = vmatpush1.msra.mxu0 %v443
        %483 = vmatprep.subr.mxu0 0.0
        %484 = vmatpush1.msra.mxu0 0.0
        %485 = vmatprep.subr.mxu0 0.0
        %486 = vmatpush1.msra.mxu0 0.0
        %487 = vmatprep.subr.mxu0 0.0
        %488 = vmatpush1.msra.mxu0 0.0
        %489 = vmatprep.subr.mxu0 0.0
        %490 = vmatpush1.msra.mxu0 0.0
        %491 = vmatprep.subr.mxu0 0.0
        %492 = vmatpush1.msra.mxu0 0.0
        %493 = vmatprep.subr.mxu0 0.0
        %494 = vmatpush1.msra.mxu0 0.0
        %495 = vmatprep.subr.mxu0 0.0
        %496 = vmatpush1.msra.mxu0 0.0
        %497 = vmatprep.subr.mxu0 0.0
        %498 = vmatpush1.msra.mxu0 0.0
        %499 = vmatprep.subr.mxu0 0.0
        %500 = vmatpush1.msra.mxu0 0.0
        %501 = vmatprep.subr.mxu0 0.0
        %502 = vmatpush1.msra.mxu0 0.0
        %503 = vmatprep.subr.mxu0 0.0
        %504 = vmatpush1.msra.mxu0 0.0
        %505 = vmatprep.subr.mxu0 0.0
        %506 = vmatpush1.msra.mxu0 0.0
        %507 = vmatprep.subr.mxu0 0.0
        %508 = vmatpush1.msra.mxu0 0.0
        %509 = vmatprep.subr.mxu0 0.0
        %510 = vmatpush1.msra.mxu0 0.0
        %511 = vmatprep.subr.mxu0 0.0
        %512 = vmatpush1.msra.mxu0 0.0
        %513 = vmatprep.subr.mxu0 0.0
        %514 = vmatpush1.msra.mxu0 0.0
        %515 = vmatprep.mubr.f32.mxu0 0.0
        %516 = vmatmul.mubr.f32.gmra.mrb[0].mxu0 %v426
        %v517 = vpop.f32.mrb[0].mxu0
        %v518 = vadd.f32 %v449, %v517
        %v519 = vpop.f32.mrb[0].mxu0
        %520 = vmatprep.mubr.f32.mxu0 0.0
        %521 = vmatmul.mubr.f32.gmra.mrb[0].mxu0 %v427
        %v522 = vpop.f32.mrb[0].mxu0
        %v523 = vadd.f32 %v449, %v522
        %v524 = vpop.f32.mrb[0].mxu0
        %525 = vdwg.mxu0
        %v526 = vmax.f32 %v518, 0.0
        %v527 = vmax.f32 %v523, 0.0
        %v528 = vlaneseq
        %v529 = vshrl.u32 %v528, 7
        %v530 = vadd.s32 %v529, 8
        %vm531 = vcmp.lt.s32.totalorder %v529, 0
        %v532 = vsub.s32 0, %v529
        %v533 = vsel %vm531, %v532, %v529
        %v534 = vshrl.u32 %v533, 4
        %v535 = vand.u32 %v533, 15
        %v536 = vsub.s32 0, %v535
        %v537 = vsel %vm531, %v536, %v535
        %vm538 = vcmp.lt.s32.totalorder %v530, 0
        %v539 = vsub.s32 0, %v530
        %v540 = vsel %vm538, %v539, %v530
        %v541 = vshrl.u32 %v540, 4
        %v542 = vand.u32 %v540, 15
        %v543 = vsub.s32 0, %v542
        %v544 = vsel %vm538, %v543, %v542
        %vm545 = vcmp.ne.s32.totalorder %v537, 0
        %vm546 = vcmp.ne.s32.totalorder %v544, 0
        %vm547 = vcmp.lt.s32.totalorder %v537, 0
        %vm548 = vcmp.lt.s32.totalorder %v544, 0
        %vm549 = vmand %vm547, %vm545
        %vm550 = vmand %vm548, %vm546
        %v551 = vadd.s32 %v537, 16
        %v552 = vadd.s32 %v544, 16
        %v553 = vsel %vm549, %v551, %v537
        %v554 = vsel %vm550, %v552, %v544
        %vm555 = vcmp.eq.s32.totalorder %v553, 0
        %vm556 = vcmp.eq.s32.totalorder %v554, 0
        %v557 = vrot.slane %v526, 7
        %v558 = vrot.slane %v527, 7
        %vm559 = vcmp.lt.s32.totalorder %v529, 1
        %v560 = vsel %vm559, %v557, %v558
        %v561 = vsel %vm559, %v558, %v557
        %v562 = vsel %vm555, 1, 0
        %v563 = vsel %vm556, 1, 0
        %vm564 = vcmp.eq.s32.totalorder %v562, 1
        %vm565 = vcmp.eq.s32.totalorder %v563, 1
        %v566 = vsel %vm564, 0.0, %v561
        %v567 = vsel %vm565, 0.0, %v560
        %vm568 = vcmp.eq.s32.totalorder %v553, 15
        %vm569 = vcmp.eq.s32.totalorder %v554, 15
        %v570 = vrot.slane %v526, 1
        %v571 = vrot.slane %v527, 1
        %vm572 = vcmp.lt.s32.totalorder %v529, 7
        %v573 = vsel %vm572, %v570, %v571
        %v574 = vsel %vm572, %v571, %v570
        %v575 = vsel %vm568, 1, 0
        %v576 = vsel %vm569, 1, 0
        %vm577 = vcmp.eq.s32.totalorder %v575, 1
        %vm578 = vcmp.eq.s32.totalorder %v576, 1
        %v579 = vsel %vm577, 0.0, %v573
        %v580 = vsel %vm578, 0.0, %v574
        %v581 = vld [vmem:[#allocation7] sm:$0xff]
        %v582 = vld [vmem:[#allocation7 + $0x8] sm:$0xff]
        %v583 = vld [vmem:[#allocation7 + $0x10] sm:$0xff]
        %v584 = vld [vmem:[#allocation7 + $0x18] sm:$0xff]
        %v585 = vld [vmem:[#allocation7 + $0x20] sm:$0xff]
        %v586 = vld [vmem:[#allocation7 + $0x28] sm:$0xff]
        %v587 = vld [vmem:[#allocation7 + $0x30] sm:$0xff]
        %v588 = vld [vmem:[#allocation7 + $0x38] sm:$0xff]
        %v589 = vld [vmem:[#allocation7 + $0x40] sm:$0xff]
        %v590 = vld [vmem:[#allocation7 + $0x48] sm:$0xff]
        %v591 = vld [vmem:[#allocation7 + $0x50] sm:$0xff]
        %v592 = vld [vmem:[#allocation7 + $0x58] sm:$0xff]
        %v593 = vld [vmem:[#allocation7 + $0x60] sm:$0xff]
        %v594 = vld [vmem:[#allocation7 + $0x68] sm:$0xff]
        %v595 = vld [vmem:[#allocation7 + $0x70] sm:$0xff]
        %v596 = vld [vmem:[#allocation7 + $0x78] sm:$0xff]
        %v597 = vld [vmem:[#allocation8] sm:$0xff]
        %v598 = vld [vmem:[#allocation8 + $0x8] sm:$0xff]
        %v599 = vld [vmem:[#allocation8 + $0x10] sm:$0xff]
        %v600 = vld [vmem:[#allocation8 + $0x18] sm:$0xff]
        %v601 = vld [vmem:[#allocation8 + $0x20] sm:$0xff]
        %v602 = vld [vmem:[#allocation8 + $0x28] sm:$0xff]
        %v603 = vld [vmem:[#allocation8 + $0x30] sm:$0xff]
        %v604 = vld [vmem:[#allocation8 + $0x38] sm:$0xff]
        %v605 = vld [vmem:[#allocation8 + $0x40] sm:$0xff]
        %v606 = vld [vmem:[#allocation8 + $0x48] sm:$0xff]
        %v607 = vld [vmem:[#allocation8 + $0x50] sm:$0xff]
        %v608 = vld [vmem:[#allocation8 + $0x58] sm:$0xff]
        %v609 = vld [vmem:[#allocation8 + $0x60] sm:$0xff]
        %v610 = vld [vmem:[#allocation8 + $0x68] sm:$0xff]
        %v611 = vld [vmem:[#allocation8 + $0x70] sm:$0xff]
        %v612 = vld [vmem:[#allocation8 + $0x78] sm:$0xff]
        %613 = vmatprep.subr.mxu0 0.0
        %614 = vmatpush1.msra.mxu0 %v597
        %615 = vmatprep.subr.mxu0 0.0
        %616 = vmatpush1.msra.mxu0 %v598
        %617 = vmatprep.subr.mxu0 0.0
        %618 = vmatpush1.msra.mxu0 %v599
        %619 = vmatprep.subr.mxu0 0.0
        %620 = vmatpush1.msra.mxu0 %v600
        %621 = vmatprep.subr.mxu0 0.0
        %622 = vmatpush1.msra.mxu0 %v601
        %623 = vmatprep.subr.mxu0 0.0
        %624 = vmatpush1.msra.mxu0 %v602
        %625 = vmatprep.subr.mxu0 0.0
        %626 = vmatpush1.msra.mxu0 %v603
        %627 = vmatprep.subr.mxu0 0.0
        %628 = vmatpush1.msra.mxu0 %v604
        %629 = vmatprep.subr.mxu0 0.0
        %630 = vmatpush1.msra.mxu0 %v605
        %631 = vmatprep.subr.mxu0 0.0
        %632 = vmatpush1.msra.mxu0 %v606
        %633 = vmatprep.subr.mxu0 0.0
        %634 = vmatpush1.msra.mxu0 %v607
        %635 = vmatprep.subr.mxu0 0.0
        %636 = vmatpush1.msra.mxu0 %v608
        %637 = vmatprep.subr.mxu0 0.0
        %638 = vmatpush1.msra.mxu0 %v609
        %639 = vmatprep.subr.mxu0 0.0
        %640 = vmatpush1.msra.mxu0 %v610
        %641 = vmatprep.subr.mxu0 0.0
        %642 = vmatpush1.msra.mxu0 %v611
        %643 = vmatprep.subr.mxu0 0.0
        %644 = vmatpush1.msra.mxu0 %v612
        %645 = vmatprep.subr.mxu0 0.0
        %646 = vmatpush1.msra.mxu0 0.0
        %647 = vmatprep.subr.mxu0 0.0
        %648 = vmatpush1.msra.mxu0 0.0
        %649 = vmatprep.subr.mxu0 0.0
        %650 = vmatpush1.msra.mxu0 0.0
        %651 = vmatprep.subr.mxu0 0.0
        %652 = vmatpush1.msra.mxu0 0.0
        %653 = vmatprep.subr.mxu0 0.0
        %654 = vmatpush1.msra.mxu0 0.0
        %655 = vmatprep.subr.mxu0 0.0
        %656 = vmatpush1.msra.mxu0 0.0
        %657 = vmatprep.subr.mxu0 0.0
        %658 = vmatpush1.msra.mxu0 0.0
        %659 = vmatprep.subr.mxu0 0.0
        %660 = vmatpush1.msra.mxu0 0.0
        %661 = vmatprep.subr.mxu0 0.0
        %662 = vmatpush1.msra.mxu0 0.0
        %663 = vmatprep.subr.mxu0 0.0
        %664 = vmatpush1.msra.mxu0 0.0
        %665 = vmatprep.subr.mxu0 0.0
        %666 = vmatpush1.msra.mxu0 0.0
        %667 = vmatprep.subr.mxu0 0.0
        %668 = vmatpush1.msra.mxu0 0.0
        %669 = vmatprep.subr.mxu0 0.0
        %670 = vmatpush1.msra.mxu0 0.0
        %671 = vmatprep.subr.mxu0 0.0
        %672 = vmatpush1.msra.mxu0 0.0
        %673 = vmatprep.subr.mxu0 0.0
        %674 = vmatpush1.msra.mxu0 0.0
        %675 = vmatprep.subr.mxu0 0.0
        %676 = vmatpush1.msra.mxu0 0.0
        %677 = vmatprep.mubr.f32.mxu0 0.0
        %678 = vmatmul.mubr.f32.gmra.mrb[0].mxu0 %v526
        %v679 = vpop.f32.mrb[0].mxu0
        %v680 = vadd.f32 0.0, %v679
        %v681 = vpop.f32.mrb[0].mxu0
        %682 = vmatprep.mubr.f32.mxu0 0.0
        %683 = vmatmul.mubr.f32.gmra.mrb[0].mxu0 %v527
        %v684 = vpop.f32.mrb[0].mxu0
        %v685 = vadd.f32 0.0, %v684
        %v686 = vpop.f32.mrb[0].mxu0
        %687 = vdwg.mxu0
        %688 = vmatprep.subr.mxu0 0.0
        %689 = vmatpush1.msra.mxu0 %v581
        %690 = vmatprep.subr.mxu0 0.0
        %691 = vmatpush1.msra.mxu0 %v582
        %692 = vmatprep.subr.mxu0 0.0
        %693 = vmatpush1.msra.mxu0 %v583
        %694 = vmatprep.subr.mxu0 0.0
        %695 = vmatpush1.msra.mxu0 %v584
        %696 = vmatprep.subr.mxu0 0.0
        %697 = vmatpush1.msra.mxu0 %v585
        %698 = vmatprep.subr.mxu0 0.0
        %699 = vmatpush1.msra.mxu0 %v586
        %700 = vmatprep.subr.mxu0 0.0
        %701 = vmatpush1.msra.mxu0 %v587
        %702 = vmatprep.subr.mxu0 0.0
        %703 = vmatpush1.msra.mxu0 %v588
        %704 = vmatprep.subr.mxu0 0.0
        %705 = vmatpush1.msra.mxu0 %v589
        %706 = vmatprep.subr.mxu0 0.0
        %707 = vmatpush1.msra.mxu0 %v590
        %708 = vmatprep.subr.mxu0 0.0
        %709 = vmatpush1.msra.mxu0 %v591
        %710 = vmatprep.subr.mxu0 0.0
        %711 = vmatpush1.msra.mxu0 %v592
        %712 = vmatprep.subr.mxu0 0.0
        %713 = vmatpush1.msra.mxu0 %v593
        %714 = vmatprep.subr.mxu0 0.0
        %715 = vmatpush1.msra.mxu0 %v594
        %716 = vmatprep.subr.mxu0 0.0
        %717 = vmatpush1.msra.mxu0 %v595
        %718 = vmatprep.subr.mxu0 0.0
        %719 = vmatpush1.msra.mxu0 %v596
        %720 = vmatprep.subr.mxu0 0.0
        %721 = vmatpush1.msra.mxu0 0.0
        %722 = vmatprep.subr.mxu0 0.0
        %723 = vmatpush1.msra.mxu0 0.0
        %724 = vmatprep.subr.mxu0 0.0
        %725 = vmatpush1.msra.mxu0 0.0
        %726 = vmatprep.subr.mxu0 0.0
        %727 = vmatpush1.msra.mxu0 0.0
        %728 = vmatprep.subr.mxu0 0.0
        %729 = vmatpush1.msra.mxu0 0.0
        %730 = vmatprep.subr.mxu0 0.0
        %731 = vmatpush1.msra.mxu0 0.0
        %732 = vmatprep.subr.mxu0 0.0
        %733 = vmatpush1.msra.mxu0 0.0
        %734 = vmatprep.subr.mxu0 0.0
        %735 = vmatpush1.msra.mxu0 0.0
        %736 = vmatprep.subr.mxu0 0.0
        %737 = vmatpush1.msra.mxu0 0.0
        %738 = vmatprep.subr.mxu0 0.0
        %739 = vmatpush1.msra.mxu0 0.0
        %740 = vmatprep.subr.mxu0 0.0
        %741 = vmatpush1.msra.mxu0 0.0
        %742 = vmatprep.subr.mxu0 0.0
        %743 = vmatpush1.msra.mxu0 0.0
        %744 = vmatprep.subr.mxu0 0.0
        %745 = vmatpush1.msra.mxu0 0.0
        %746 = vmatprep.subr.mxu0 0.0
        %747 = vmatpush1.msra.mxu0 0.0
        %748 = vmatprep.subr.mxu0 0.0
        %749 = vmatpush1.msra.mxu0 0.0
        %750 = vmatprep.subr.mxu0 0.0
        %751 = vmatpush1.msra.mxu0 0.0
        %752 = vmatprep.mubr.f32.mxu0 0.0
        %753 = vmatmul.mubr.f32.gmra.mrb[0].mxu0 %v566
        %v754 = vpop.f32.mrb[0].mxu0
        %v755 = vadd.f32 %v680, %v754
        %v756 = vpop.f32.mrb[0].mxu0
        %757 = vmatprep.mubr.f32.mxu0 0.0
        %758 = vmatmul.mubr.f32.gmra.mrb[0].mxu0 %v567
        %v759 = vpop.f32.mrb[0].mxu0
        %v760 = vadd.f32 %v685, %v759
        %v761 = vpop.f32.mrb[0].mxu0
        %762 = vdwg.mxu0
        %v763 = vld [vmem:[#allocation10] sm:$0xff]
        %v764 = vld [vmem:[#allocation10 + $0x8] sm:$0xff]
        %v765 = vld [vmem:[#allocation10 + $0x10] sm:$0xff]
        %v766 = vld [vmem:[#allocation10 + $0x18] sm:$0xff]
        %v767 = vld [vmem:[#allocation10 + $0x20] sm:$0xff]
        %v768 = vld [vmem:[#allocation10 + $0x28] sm:$0xff]
        %v769 = vld [vmem:[#allocation10 + $0x30] sm:$0xff]
        %v770 = vld [vmem:[#allocation10 + $0x38] sm:$0xff]
        %v771 = vld [vmem:[#allocation10 + $0x40] sm:$0xff]
        %v772 = vld [vmem:[#allocation10 + $0x48] sm:$0xff]
        %v773 = vld [vmem:[#allocation10 + $0x50] sm:$0xff]
        %v774 = vld [vmem:[#allocation10 + $0x58] sm:$0xff]
        %v775 = vld [vmem:[#allocation10 + $0x60] sm:$0xff]
        %v776 = vld [vmem:[#allocation10 + $0x68] sm:$0xff]
        %v777 = vld [vmem:[#allocation10 + $0x70] sm:$0xff]
        %v778 = vld [vmem:[#allocation10 + $0x78] sm:$0xff]
        %779 = vmatprep.subr.mxu0 0.0
        %780 = vmatpush1.msra.mxu0 %v763
        %781 = vmatprep.subr.mxu0 0.0
        %782 = vmatpush1.msra.mxu0 %v764
        %783 = vmatprep.subr.mxu0 0.0
        %784 = vmatpush1.msra.mxu0 %v765
        %785 = vmatprep.subr.mxu0 0.0
        %786 = vmatpush1.msra.mxu0 %v766
        %787 = vmatprep.subr.mxu0 0.0
        %788 = vmatpush1.msra.mxu0 %v767
        %789 = vmatprep.subr.mxu0 0.0
        %790 = vmatpush1.msra.mxu0 %v768
        %791 = vmatprep.subr.mxu0 0.0
        %792 = vmatpush1.msra.mxu0 %v769
        %793 = vmatprep.subr.mxu0 0.0
        %794 = vmatpush1.msra.mxu0 %v770
        %795 = vmatprep.subr.mxu0 0.0
        %796 = vmatpush1.msra.mxu0 %v771
        %797 = vmatprep.subr.mxu0 0.0
        %798 = vmatpush1.msra.mxu0 %v772
        %799 = vmatprep.subr.mxu0 0.0
        %800 = vmatpush1.msra.mxu0 %v773
        %801 = vmatprep.subr.mxu0 0.0
        %802 = vmatpush1.msra.mxu0 %v774
        %803 = vmatprep.subr.mxu0 0.0
        %804 = vmatpush1.msra.mxu0 %v775
        %805 = vmatprep.subr.mxu0 0.0
        %806 = vmatpush1.msra.mxu0 %v776
        %807 = vmatprep.subr.mxu0 0.0
        %808 = vmatpush1.msra.mxu0 %v777
        %809 = vmatprep.subr.mxu0 0.0
        %810 = vmatpush1.msra.mxu0 %v778
        %811 = vmatprep.subr.mxu0 0.0
        %812 = vmatpush1.msra.mxu0 0.0
        %813 = vmatprep.subr.mxu0 0.0
        %814 = vmatpush1.msra.mxu0 0.0
        %815 = vmatprep.subr.mxu0 0.0
        %816 = vmatpush1.msra.mxu0 0.0
        %817 = vmatprep.subr.mxu0 0.0
        %818 = vmatpush1.msra.mxu0 0.0
        %819 = vmatprep.subr.mxu0 0.0
        %820 = vmatpush1.msra.mxu0 0.0
        %821 = vmatprep.subr.mxu0 0.0
        %822 = vmatpush1.msra.mxu0 0.0
        %823 = vmatprep.subr.mxu0 0.0
        %824 = vmatpush1.msra.mxu0 0.0
        %825 = vmatprep.subr.mxu0 0.0
        %826 = vmatpush1.msra.mxu0 0.0
        %827 = vmatprep.subr.mxu0 0.0
        %828 = vmatpush1.msra.mxu0 0.0
        %829 = vmatprep.subr.mxu0 0.0
        %830 = vmatpush1.msra.mxu0 0.0
        %831 = vmatprep.subr.mxu0 0.0
        %832 = vmatpush1.msra.mxu0 0.0
        %833 = vmatprep.subr.mxu0 0.0
        %834 = vmatpush1.msra.mxu0 0.0
        %835 = vmatprep.subr.mxu0 0.0
        %836 = vmatpush1.msra.mxu0 0.0
        %837 = vmatprep.subr.mxu0 0.0
        %838 = vmatpush1.msra.mxu0 0.0
        %839 = vmatprep.subr.mxu0 0.0
        %840 = vmatpush1.msra.mxu0 0.0
        %841 = vmatprep.subr.mxu0 0.0
        %842 = vmatpush1.msra.mxu0 0.0
        %843 = vmatprep.mubr.f32.mxu0 0.0
        %844 = vmatmul.mubr.f32.gmra.mrb[0].mxu0 %v579
        %v845 = vpop.f32.mrb[0].mxu0
        %v846 = vadd.f32 0.0, %v845
        %v847 = vpop.f32.mrb[0].mxu0
        %848 = vmatprep.mubr.f32.mxu0 0.0
        %849 = vmatmul.mubr.f32.gmra.mrb[0].mxu0 %v580
        %v850 = vpop.f32.mrb[0].mxu0
        %v851 = vadd.f32 0.0, %v850
        %v852 = vpop.f32.mrb[0].mxu0
        %853 = vdwg.mxu0
        %v854 = vadd.f32 %v755, %v846
        %v855 = vadd.f32 %v760, %v851
        %v856 = vld [vmem:[%s7] sm:$0x1]
        %v858 = vlaneseq
        %v859 = vshrl.u32 %v858, 7
        %v860 = vsub.s32 0, %v859
        %v861 = vrot.slane %v856, %v860
        %v863 = vadd.f32 %v854, %v861
        %v864 = vadd.f32 %v855, %v861
        %v865 = vmax.f32 %v863, 0.0
        %v866 = vmax.f32 %v864, 0.0
        %v867 = vld [vmem:[#allocation11] sm:$0xff]
        %v868 = vld [vmem:[#allocation11 + $0x8] sm:$0xff]
        %v869 = vld [vmem:[#allocation11 + $0x10] sm:$0xff]
        %v870 = vld [vmem:[#allocation11 + $0x18] sm:$0xff]
        %v871 = vld [vmem:[#allocation11 + $0x20] sm:$0xff]
        %v872 = vld [vmem:[#allocation11 + $0x28] sm:$0xff]
        %v873 = vld [vmem:[#allocation11 + $0x30] sm:$0xff]
        %v874 = vld [vmem:[#allocation11 + $0x38] sm:$0xff]
        %v875 = vld [vmem:[#allocation11 + $0x40] sm:$0xff]
        %v876 = vld [vmem:[#allocation11 + $0x48] sm:$0xff]
        %v877 = vld [vmem:[#allocation11 + $0x50] sm:$0xff]
        %v878 = vld [vmem:[#allocation11 + $0x58] sm:$0xff]
        %v879 = vld [vmem:[#allocation11 + $0x60] sm:$0xff]
        %v880 = vld [vmem:[#allocation11 + $0x68] sm:$0xff]
        %v881 = vld [vmem:[#allocation11 + $0x70] sm:$0xff]
        %v882 = vld [vmem:[#allocation11 + $0x78] sm:$0xff]
        %v883 = vld [vmem:[%s8] sm:$0x1]
        %v885 = vlaneseq
        %v886 = vshrl.u32 %v885, 7
        %v887 = vsub.s32 0, %v886
        %v888 = vrot.slane %v883, %v887
        %890 = vmatprep.subr.mxu0 0.0
        %891 = vmatpush1.msra.mxu0 %v867
        %892 = vmatprep.subr.mxu0 0.0
        %893 = vmatpush1.msra.mxu0 %v868
        %894 = vmatprep.subr.mxu0 0.0
        %895 = vmatpush1.msra.mxu0 %v869
        %896 = vmatprep.subr.mxu0 0.0
        %897 = vmatpush1.msra.mxu0 %v870
        %898 = vmatprep.subr.mxu0 0.0
        %899 = vmatpush1.msra.mxu0 %v871
        %900 = vmatprep.subr.mxu0 0.0
        %901 = vmatpush1.msra.mxu0 %v872
        %902 = vmatprep.subr.mxu0 0.0
        %903 = vmatpush1.msra.mxu0 %v873
        %904 = vmatprep.subr.mxu0 0.0
        %905 = vmatpush1.msra.mxu0 %v874
        %906 = vmatprep.subr.mxu0 0.0
        %907 = vmatpush1.msra.mxu0 %v875
        %908 = vmatprep.subr.mxu0 0.0
        %909 = vmatpush1.msra.mxu0 %v876
        %910 = vmatprep.subr.mxu0 0.0
        %911 = vmatpush1.msra.mxu0 %v877
        %912 = vmatprep.subr.mxu0 0.0
        %913 = vmatpush1.msra.mxu0 %v878
        %914 = vmatprep.subr.mxu0 0.0
        %915 = vmatpush1.msra.mxu0 %v879
        %916 = vmatprep.subr.mxu0 0.0
        %917 = vmatpush1.msra.mxu0 %v880
        %918 = vmatprep.subr.mxu0 0.0
        %919 = vmatpush1.msra.mxu0 %v881
        %920 = vmatprep.subr.mxu0 0.0
        %921 = vmatpush1.msra.mxu0 %v882
        %922 = vmatprep.subr.mxu0 0.0
        %923 = vmatpush1.msra.mxu0 0.0
        %924 = vmatprep.subr.mxu0 0.0
        %925 = vmatpush1.msra.mxu0 0.0
        %926 = vmatprep.subr.mxu0 0.0
        %927 = vmatpush1.msra.mxu0 0.0
        %928 = vmatprep.subr.mxu0 0.0
        %929 = vmatpush1.msra.mxu0 0.0
        %930 = vmatprep.subr.mxu0 0.0
        %931 = vmatpush1.msra.mxu0 0.0
        %932 = vmatprep.subr.mxu0 0.0
        %933 = vmatpush1.msra.mxu0 0.0
        %934 = vmatprep.subr.mxu0 0.0
        %935 = vmatpush1.msra.mxu0 0.0
        %936 = vmatprep.subr.mxu0 0.0
        %937 = vmatpush1.msra.mxu0 0.0
        %938 = vmatprep.subr.mxu0 0.0
        %939 = vmatpush1.msra.mxu0 0.0
        %940 = vmatprep.subr.mxu0 0.0
        %941 = vmatpush1.msra.mxu0 0.0
        %942 = vmatprep.subr.mxu0 0.0
        %943 = vmatpush1.msra.mxu0 0.0
        %944 = vmatprep.subr.mxu0 0.0
        %945 = vmatpush1.msra.mxu0 0.0
        %946 = vmatprep.subr.mxu0 0.0
        %947 = vmatpush1.msra.mxu0 0.0
        %948 = vmatprep.subr.mxu0 0.0
        %949 = vmatpush1.msra.mxu0 0.0
        %950 = vmatprep.subr.mxu0 0.0
        %951 = vmatpush1.msra.mxu0 0.0
        %952 = vmatprep.subr.mxu0 0.0
        %953 = vmatpush1.msra.mxu0 0.0
        %954 = vmatprep.mubr.f32.mxu0 0.0
        %955 = vmatmul.mubr.f32.gmra.mrb[0].mxu0 %v865
        %v956 = vpop.f32.mrb[0].mxu0
        %v957 = vadd.f32 %v888, %v956
        %v958 = vpop.f32.mrb[0].mxu0
        %959 = vmatprep.mubr.f32.mxu0 0.0
        %960 = vmatmul.mubr.f32.gmra.mrb[0].mxu0 %v866
        %v961 = vpop.f32.mrb[0].mxu0
        %v962 = vadd.f32 %v888, %v961
        %v963 = vpop.f32.mrb[0].mxu0
        %964 = vdwg.mxu0
        %v965 = vadd.f32 %v957, %v426
        %v966 = vadd.f32 %v962, %v427
        %v967 = vmax.f32 %v965, 0.0
        %v968 = vmax.f32 %v966, 0.0
        %969 = vst [vmem:[%s423] sm:$0xff] %v967
        %970 = vst [vmem:[%s423 + $0x8] sm:$0xff] %v968
        %s971 = sand.u32 %s231, 1
        %s972 = scalar_lea.sflag [#allocation4], %s971
        %s973 = sand.u32 %s231, 1
        %s974 = smul.addr %s973, 16
        %s975 = scalar_lea.vmem [#allocation13], %s974
        // Predicated region
        $region81: #{tpu_custom_call.1} parent=55 // pred_check
          %p976 = pneg %p241
        $region82: #{tpu_custom_call.1} parent=55 // pred_check_branch
          %978 = sbr.rel (%p976) target = $region84
        $region83: #{tpu_custom_call.1} parent=55 // pred_region
          %s979 = smul.u32 2, %s29
          %s981 = ssub.s32 256, 256
          %982 = vsyncadd %s972, %s981
          %s983 = smul.addr %s979, 128
          %s984 = scalar_lea.hbm %s9, %s983
          %s985 = sshll.u32 %s975, 4
          %s986 = int_to_ptr.vmem [resolvable:$true] %s985
          %991 = dma.vmem_to_hbm [thread:$0]  %s986, 256, %s984, %s972, 128, 128, 8
        $region84: #{tpu_custom_call.1} parent=55 // pred_fallthru
          _
      $region56: #{tpu_custom_call.1} parent=5 // pred_fallthru
        _
      %p992 = scmp.le.s32.totalorder 2, %s24
      // Predicated region
      $region85: #{tpu_custom_call.1} parent=5 // pred_check
        %p993 = pneg %p992
      $region86: #{tpu_custom_call.1} parent=5 // pred_check_branch
        %995 = sbr.rel (%p993) target = $region88
      $region87: #{tpu_custom_call.1} parent=5 // pred_region
        %s996 = ssub.s32 %s24, 2
        // Predicated region
        $region89: #{tpu_custom_call.1} parent=87 // pred_check
          %p997 = pneg %p247
        $region90: #{tpu_custom_call.1} parent=87 // pred_check_branch
          %999 = sbr.rel (%p997) target = $region92
        $region91: #{tpu_custom_call.1} parent=87 // pred_region
          %s1000 = sand.u32 %s232, 1
          %s1001 = scalar_lea.sflag [#allocation4], %s1000
          %s1002 = sand.u32 %s232, 1
          %s1003 = smul.addr %s1002, 16
          %s1004 = scalar_lea.vmem [#allocation13], %s1003
          %1005 = dma.done %s1001, 256
        $region92: #{tpu_custom_call.1} parent=87 // pred_fallthru
          _
      $region88: #{tpu_custom_call.1} parent=5 // pred_fallthru
        _
    $region6: #{tpu_custom_call.1} parent=1 // loop_footer
      %s28 = sadd.s32 1, %s24
    $region7: #{tpu_custom_call.1} parent=1 // loop_footer_branch
      %23 = sbr.rel target = $region3
    $region8: #{tpu_custom_call.1} parent=1 // loop_exit
      _
    %1006 = vsyncpa [#allocation3], 1
    %s1007 = scalar_lea.sflag [#allocation3], 1
    %1008 = vsyncpa %s1007, 1
    %1009 = vsyncpa [#allocation6], 1
    %1010 = vsyncpa [#allocation9], 1
    %1011 = vsyncpa [#allocation12], 1
    %1012 = vsyncpa [#allocation4], 1
    %s1013 = scalar_lea.sflag [#allocation4], 1
    %1014 = vsyncpa %s1013, 1

</llo_original>
